<compile_context>
chip_gen: v7x
topology: tpu7x:2x2x1
jax: 0.10.0
libtpu: 0.0.40
codegen_flags: <defaults>
</compile_context>

<pallas_src>
import functools
import itertools
import math

import numpy as np

import jax
import jax.numpy as jnp
from jax import lax
from jax.experimental import pallas as pl
from jax.experimental.pallas import tpu as pltpu


def _round_up(a, b):
    return (a + b - 1) // b * b


# ---------------------------------------------------------------------------
# Kernel: one row-tile (tile_rows x W) of lane-dense anchor boxes per step
# ---------------------------------------------------------------------------
def _anchors_kernel(const_ref, out_ref, *, level_tiles, tile_rows, g, width):
    """Write one (tile_rows, width) tile of anchors.

    const_ref : (3, width) f32  row 0: 1.0 on x-coordinate columns else 0.0
                                row 1: signed half-size base (per stride unit)
                                row 2: cell offset within the row (col // 4A)
    out_ref   : (tile_rows, width)
    level_tiles: static tuple of (first_tile_index, stride, nx) per level,
                 sorted by first_tile_index.
    """
    t = pl.program_id(0)

    # Resolve per-tile level metadata with a short scalar where-chain
    # (L <= ~7 levels -> a handful of scalar ops, negligible).
    first0, stride0, nx0 = level_tiles[0]
    stride = jnp.float32(stride0)
    nx = jnp.float32(nx0)
    nx_inv = jnp.float32(1.0 / nx0)
    tile_in_lvl = t - first0
    for first, s, nxl in level_tiles[1:]:
        in_lvl = t >= first
        stride = jnp.where(in_lvl, jnp.float32(s), stride)
        nx = jnp.where(in_lvl, jnp.float32(nxl), nx)
        nx_inv = jnp.where(in_lvl, jnp.float32(1.0 / nxl), nx_inv)
        tile_in_lvl = jnp.where(in_lvl, t - first, tile_in_lvl)
    base = (tile_in_lvl * (tile_rows * g)).astype(jnp.float32)

    consts = const_ref[...]           # (3, width), hoisted once per tile
    xsel = consts[0:1, :]             # (1, width)
    d0 = consts[1:2, :]
    colc = consts[2:3, :]

    # Flat cell index (within the level) for every element of the tile.
    rowf = lax.broadcasted_iota(jnp.int32, (tile_rows, width), 0).astype(jnp.float32)
    cell = base + rowf * float(g) + colc

    # cell -> (xi, yi) with float-only math; margin 0.5/nx >> f32 rounding.
    yi = jnp.floor((cell + 0.5) * nx_inv)
    xi = cell - yi * nx

    center = xsel * (xi + 0.5) + (1.0 - xsel) * (yi + 0.5)
    out_ref[...] = ((center + d0) * stride).astype(out_ref.dtype)


# ---------------------------------------------------------------------------
# Wrapper (static metadata in Python, hot path in the kernel)
# ---------------------------------------------------------------------------
def anchors_forward(x, *, anchor_scale, levels, scales, ratios, tile_rows=None):
    """JAX/Pallas equivalent of Anchors.forward: returns (N_total, 4) boxes."""
    h, w = int(x.shape[-2]), int(x.shape[-1])
    strides = [2 ** lv for lv in levels]
    num_a = len(scales) * len(ratios)
    ac = 4 * num_a
    g = 128 // math.gcd(ac, 128)      # cells packed per output row
    width = g * ac                    # = lcm(ac, 128): lane-dense multiple of 128

    # Per-column constant patterns (one cell = ac columns), tiled g times.
    d0_cell, xsel_cell = [], []
    for scale, (ratio_w, ratio_h) in itertools.product(scales, ratios):
        hw = anchor_scale * scale * ratio_w / 2.0   # half sizes per unit stride
        hh = anchor_scale * scale * ratio_h / 2.0
        d0_cell += [-hw, -hh, hw, hh]
        xsel_cell += [1.0, 0.0, 1.0, 0.0]
    xsel_row = np.tile(np.asarray(xsel_cell, np.float32), g)
    d0_row = np.tile(np.asarray(d0_cell, np.float32), g)
    colc_row = np.repeat(np.arange(g, dtype=np.float32), ac)
    consts = jnp.asarray(np.stack([xsel_row, d0_row, colc_row], axis=0))  # (3, W)

    # Static per-level geometry.
    level_rows = []
    for stride in strides:
        # Same restriction as the PyTorch module's own assert.
        assert h % stride == 0 and w % stride == 0
        ny, nx = h // stride, w // stride
        n = ny * nx
        level_rows.append((-(-n // g), nx, stride, n))   # (rows, nx, stride, cells)

    if tile_rows is None:
        # Keep output blocks a few hundred KB (>= grid-step amortization,
        # << scoped VMEM limits on v5e/v7x); shrink for tiny feature maps.
        tile_rows = max(8, min(64, _round_up(max(r for r, *_ in level_rows), 8)))

    # Pad every level to a whole number of tiles so each tile is single-level
    # and every store is unmasked / sublane-aligned.
    level_tiles = []   # (first_tile_index, stride, nx)
    spans = []         # (row_start, rows_padded, n_cells)
    row_off = 0
    tile_off = 0
    for rows, nx, stride, n in level_rows:
        rows_p = _round_up(rows, tile_rows)
        level_tiles.append((tile_off, stride, nx))
        spans.append((row_off, rows_p, n))
        row_off += rows_p
        tile_off += rows_p // tile_rows
    total_rows = row_off
    num_tiles = tile_off

    kernel = functools.partial(_anchors_kernel, level_tiles=tuple(level_tiles),
                               tile_rows=tile_rows, g=g, width=width)
    out2d = pl.pallas_call(
        kernel,
        out_shape=jax.ShapeDtypeStruct((total_rows, width), x.dtype),
        grid=(num_tiles,),
        in_specs=[pl.BlockSpec((3, width), lambda t: (0, 0))],
        out_specs=pl.BlockSpec((tile_rows, width), lambda t: (t, 0)),
        compiler_params=pltpu.CompilerParams(
            dimension_semantics=("parallel",)),   # shards across TCs on v7x
    )(consts)

    # Strip per-level padding with cheap static slices; the per-level reshape
    # to (cells*A, 4) is a pure row-major view of the lane-dense layout.
    pieces = []
    for row_start, rows_p, n in spans:
        lvl = out2d[row_start:row_start + rows_p]                # (rows_p, W)
        pieces.append(lvl.reshape(rows_p * g * num_a, 4)[: n * num_a])
    return jnp.concatenate(pieces, axis=0)


# ---------------------------------------------------------------------------
# Pure-numpy transcription of the PyTorch module (verification only)
# ---------------------------------------------------------------------------
def _anchors_reference(h, w, anchor_scale, levels, scales, ratios):
    strides = [2 ** lv for lv in levels]
    all_anchors = []
    for stride in strides:
        per_level = []
        for scale, (ratio_w, ratio_h) in itertools.product(scales, ratios):
            anchor_size = anchor_scale * stride * scale
            hw_half = anchor_size * ratio_w / 2.0
            hh_half = anchor_size * ratio_h / 2.0
            xs = np.arange(stride / 2, w, stride)
            ys = np.arange(stride / 2, h, stride)
            xv, yv = np.meshgrid(xs, ys)
            xv = xv.reshape(-1)
            yv = yv.reshape(-1)
            boxes = np.vstack((xv - hw_half, yv - hh_half,
                               xv + hw_half, yv + hh_half)).transpose()
            per_level.append(np.expand_dims(boxes, 1))
        per_level = np.concatenate(per_level, 1)
        all_anchors.append(per_level.reshape((-1, 4)))
    return np.vstack(all_anchors)


if __name__ == "__main__":
    # Small, module-consistent config (EfficientDet-style scales/ratios).
    anchor_scale = 4.0
    levels = [1, 2]                     # strides 2, 4 -> 8x8 and 4x4 grids on 16x16
    scales = [2 ** 0, 2 ** (1.0 / 3.0), 2 ** (2.0 / 3.0)]
    ratios = [(1.0, 1.0), (1.4, 0.7), (0.7, 1.4)]

    # Input feature map: only its (h, w) and dtype matter, like the PyTorch module.
    x = jax.random.normal(jax.random.PRNGKey(0), (2, 4, 16, 16), jnp.float32)

    out = anchors_forward(x, anchor_scale=anchor_scale, levels=levels,
                          scales=scales, ratios=ratios)
    out = jax.block_until_ready(out)

    ref = _anchors_reference(16, 16, anchor_scale, levels, scales, ratios)
    assert out.shape == ref.shape, (out.shape, ref.shape)      # (720, 4)
    np.testing.assert_allclose(np.asarray(out), ref.astype(np.float32),
                               rtol=1e-5, atol=1e-3)
    print("KERNEL_OK")
</pallas_src>

<mosaic_0001>
module attributes {stable_mosaic.version = 11 : i64} {
  func.func @_anchors_kernel(%arg0: i32, %arg1: memref<3x1152xf32, #tpu.memory_space<vmem>>, %arg2: memref<8x1152xf32, #tpu.memory_space<vmem>>) attributes {dimension_semantics = [#tpu.dimension_semantics<parallel>], iteration_bounds = array<i64: 2>, scalar_prefetch = 0 : i64, scratch_operands = 0 : i64, tpu.core_type = #tpu.core_type<tc>, window_params = [{pipeline_mode = #tpu.pipeline_mode<synchronous>, transform_indices = @transform_0, window_bounds = array<i64: 3, 1152>}, {transform_indices = @transform_1, window_bounds = array<i64: 8, 1152>}]} {
    %c0_i32 = arith.constant 0 : i32
    %0 = arith.subi %arg0, %c0_i32 : i32
    %c1_i32 = arith.constant 1 : i32
    %1 = arith.cmpi sge, %arg0, %c1_i32 : i32
    %cst = arith.constant 4.000000e+00 : f32
    %cst_0 = arith.constant 2.000000e+00 : f32
    %2 = arith.select %1, %cst, %cst_0 : f32
    %cst_1 = arith.constant 4.000000e+00 : f32
    %cst_2 = arith.constant 8.000000e+00 : f32
    %3 = arith.select %1, %cst_1, %cst_2 : f32
    %cst_3 = arith.constant 2.500000e-01 : f32
    %cst_4 = arith.constant 1.250000e-01 : f32
    %4 = arith.select %1, %cst_3, %cst_4 : f32
    %c1_i32_5 = arith.constant 1 : i32
    %5 = arith.subi %arg0, %c1_i32_5 : i32
    %6 = arith.select %1, %5, %0 : i32
    %c256_i32 = arith.constant 256 : i32
    %7 = arith.muli %6, %c256_i32 : i32
    %8 = arith.sitofp %7 : i32 to f32
    %c0 = arith.constant 0 : index
    %c0_6 = arith.constant 0 : index
    %9 = vector.load %arg1[%c0, %c0_6] : memref<3x1152xf32, #tpu.memory_space<vmem>>, vector<3x1152xf32>
    %10 = vector.extract_strided_slice %9 {offsets = [0, 0], sizes = [1, 1152], strides = [1, 1]} : vector<3x1152xf32> to vector<1x1152xf32>
    %11 = vector.extract_strided_slice %9 {offsets = [1, 0], sizes = [1, 1152], strides = [1, 1]} : vector<3x1152xf32> to vector<1x1152xf32>
    %12 = vector.extract_strided_slice %9 {offsets = [2, 0], sizes = [1, 1152], strides = [1, 1]} : vector<3x1152xf32> to vector<1x1152xf32>
    %13 = tpu.iota {dimensions = array<i32: 0>} : vector<8x1152xi32>
    %14 = arith.sitofp %13 : vector<8x1152xi32> to vector<8x1152xf32>
    %cst_7 = arith.constant 3.200000e+01 : f32
    %15 = vector.broadcast %cst_7 : f32 to vector<8x1152xf32>
    %16 = arith.mulf %14, %15 : vector<8x1152xf32>
    %17 = vector.broadcast %8 : f32 to vector<8x1152xf32>
    %18 = arith.addf %17, %16 : vector<8x1152xf32>
    %19 = vector.broadcast %12 : vector<1x1152xf32> to vector<8x1152xf32>
    %20 = arith.addf %18, %19 : vector<8x1152xf32>
    %cst_8 = arith.constant 5.000000e-01 : f32
    %21 = vector.broadcast %cst_8 : f32 to vector<8x1152xf32>
    %22 = arith.addf %20, %21 : vector<8x1152xf32>
    %23 = vector.broadcast %4 : f32 to vector<8x1152xf32>
    %24 = arith.mulf %22, %23 : vector<8x1152xf32>
    %25 = math.floor %24 : vector<8x1152xf32>
    %26 = vector.broadcast %3 : f32 to vector<8x1152xf32>
    %27 = arith.mulf %25, %26 : vector<8x1152xf32>
    %28 = arith.subf %20, %27 : vector<8x1152xf32>
    %cst_9 = arith.constant 5.000000e-01 : f32
    %29 = vector.broadcast %cst_9 : f32 to vector<8x1152xf32>
    %30 = arith.addf %28, %29 : vector<8x1152xf32>
    %31 = vector.broadcast %10 : vector<1x1152xf32> to vector<8x1152xf32>
    %32 = arith.mulf %31, %30 : vector<8x1152xf32>
    %cst_10 = arith.constant 1.000000e+00 : f32
    %33 = vector.broadcast %cst_10 : f32 to vector<1x1152xf32>
    %34 = arith.subf %33, %10 : vector<1x1152xf32>
    %cst_11 = arith.constant 5.000000e-01 : f32
    %35 = vector.broadcast %cst_11 : f32 to vector<8x1152xf32>
    %36 = arith.addf %25, %35 : vector<8x1152xf32>
    %37 = vector.broadcast %34 : vector<1x1152xf32> to vector<8x1152xf32>
    %38 = arith.mulf %37, %36 : vector<8x1152xf32>
    %39 = arith.addf %32, %38 : vector<8x1152xf32>
    %40 = vector.broadcast %11 : vector<1x1152xf32> to vector<8x1152xf32>
    %41 = arith.addf %39, %40 : vector<8x1152xf32>
    %42 = vector.broadcast %2 : f32 to vector<8x1152xf32>
    %43 = arith.mulf %41, %42 : vector<8x1152xf32>
    %c0_12 = arith.constant 0 : index
    %c0_13 = arith.constant 0 : index
    %44 = vector.load %arg2[%c0_12, %c0_13] : memref<8x1152xf32, #tpu.memory_space<vmem>>, vector<8x1152xf32>
    tpu.vector_store %arg2[%c0_12, %c0_13], %43 {strides = array<i32>} : memref<8x1152xf32, #tpu.memory_space<vmem>>, vector<8x1152xf32>,
    return
  }
  func.func @transform_0(%arg0: i32) -> (i32, i32) {
    %c0_i32 = arith.constant 0 : i32
    %c0_i32_0 = arith.constant 0 : i32
    %c0_i32_1 = arith.constant 0 : i32
    return %c0_i32, %c0_i32_0 : i32, i32
  }
  func.func @transform_1(%arg0: i32) -> (i32, i32) {
    %c0_i32 = arith.constant 0 : i32
    %c0_i32_0 = arith.constant 0 : i32
    return %arg0, %c0_i32 : i32, i32
  }
}

</mosaic_0001>

<llo_original>
// kernel: tpu_custom_call.1
$region0: #{tpu_custom_call.1}
  #allocation0 [shape = 'u32[]', space=smem, size = 0x4, offset = 0x4, fixed_abs, tag = 'smem constant byte address 0x4 - core index']
  #allocation1 [shape = 'u32[144,128]{1,0:T(1,128)}', space=vmem, size = 0x12000, scoped, tag = 'internal scratch']
  %s0 = inlined_call_operand.hbm [shape: f32[3,1152], index: 0, kind: input, shape index: {}]
  %s1 = inlined_call_operand.hbm [shape: f32[16,1152], index: 1, kind: output, shape index: {}]
  %s2 = sld [smem:[#allocation0]]
  $region41: #{tpu_custom_call.1} parent=0
    _
  %s4 = ssub.s32 1, %s2
  %s5 = scalar_select 0, %s4, %s2
  $region1: #{tpu_custom_call.1} parent=0
    #allocation2 [shape = 'u8[18432]{0}', space=vmem, size = 0x4800, scoped, tag = 'input window, operand 0, single buffered']
    #allocation3 [shape = 's32[2]{0}', space=sflag, size = 0x8, scoped, tag = 'scoped memory for tpu_custom_call.1']
    #allocation4 [shape = 's32[2]{0}', space=sflag, size = 0x8, scoped, tag = 'scoped memory for tpu_custom_call.1']
    #allocation5 [shape = 'u8[73728]{0}', space=vmem, size = 0x12000, scoped, tag = 'output window, operand 0']
    %6 = vsyncpa [#allocation3], 0
    %7 = vsyncpa [#allocation4], 0
    %s8 = scalar_lea.sflag [#allocation4], 1
    %9 = vsyncpa %s8, 0
    loop: start=0, step=1, limit=4
    $region2: #{tpu_custom_call.1} parent=1 // loop_pre_header
      _
    $region3: #{tpu_custom_call.1} parent=1 // loop_header
      %s11 = sphi 0, %s15
      %p12 = scmp.ge.s32.totalorder %s11, 4
      %s19 = sphi 0, %s19
      %s21 = sphi 0, %s19
      %s22 = sphi 0, %s21
      %s36 = sphi 0, %s22
      %s42 = sphi 0, %s44
      %s45 = sphi 0, %s42
      %s46 = sphi 0, %s45
      %s62 = sphi 0, %s46
    $region4: #{tpu_custom_call.1} parent=1 // loop_header_branch
      %14 = sbr.rel (%p12) target = $region8
    $region5: #{tpu_custom_call.1} parent=1 // loop_body
      %s16 = ssub.s32 %s11, 1
      %s17 = ssub.s32 %s11, 2
      %s18 = sadd.s32 %s11, 1
      %s20 = sadd.s32 %s19, 1
      %p23 = scmp.eq.s32.totalorder %s11, 1
      %p24 = scmp.ne.s32.totalorder %s19, %s21
      %p25 = scmp.eq.s32.totalorder %s11, 0
      %p26 = por %p24, %p25
      %p27 = scmp.ne.s32.totalorder %s19, %s21
      %p28 = scmp.eq.s32.totalorder %s16, 1
      %p29 = por %p27, %p28
      %p30 = scmp.ne.s32.totalorder %s21, %s22
      %p31 = scmp.eq.s32.totalorder %s16, 0
      %p32 = por %p30, %p31
      %p33 = scmp.ne.s32.totalorder %s21, %s22
      %p34 = scmp.eq.s32.totalorder %s17, 1
      %p35 = por %p33, %p34
      %p37 = scmp.ne.s32.totalorder %s22, %s36
      %p38 = scmp.eq.s32.totalorder %s17, 0
      %p39 = por %p37, %p38
      %s40 = ssub.s32 %s11, %s18
      %p41 = scmp.eq.s32.totalorder %s40, 0
      %s43 = sadd.s32 %s42, 1
      %s44 = scalar_select %p41, %s42, %s43
      %p47 = pneg %p41
      %p48 = scmp.eq.s32.totalorder %s11, 1
      %p49 = por %p47, %p48
      %p50 = scmp.ne.s32.totalorder %s42, %s45
      %p51 = scmp.eq.s32.totalorder %s11, 0
      %p52 = por %p50, %p51
      %p53 = scmp.ne.s32.totalorder %s42, %s45
      %p54 = scmp.eq.s32.totalorder %s16, 1
      %p55 = por %p53, %p54
      %p56 = scmp.ne.s32.totalorder %s45, %s46
      %p57 = scmp.eq.s32.totalorder %s16, 0
      %p58 = por %p56, %p57
      %p59 = scmp.ne.s32.totalorder %s45, %s46
      %p60 = scmp.eq.s32.totalorder %s17, 1
      %p61 = por %p59, %p60
      %p63 = scmp.ne.s32.totalorder %s46, %s62
      %p64 = scmp.eq.s32.totalorder %s17, 0
      %p65 = por %p63, %p64
      %p66 = scmp.le.s32.totalorder 1, %s11
      %p67 = scmp.lt.s32.totalorder %s11, 3
      %p68 = pnand %p66, %p67
      %p69 = pneg %p68
      // Predicated region
      $region9: #{tpu_custom_call.1} parent=5 // pred_check
        _
      $region10: #{tpu_custom_call.1} parent=5 // pred_check_branch
        %71 = sbr.rel (%p68) target = $region12
      $region11: #{tpu_custom_call.1} parent=5 // pred_region
        %s72 = ssub.s32 %s11, 1
        // Predicated region
        $region13: #{tpu_custom_call.1} parent=11 // pred_check
          %p73 = pneg %p32
        $region14: #{tpu_custom_call.1} parent=11 // pred_check_branch
          %75 = sbr.rel (%p73) target = $region16
        $region15: #{tpu_custom_call.1} parent=11 // pred_region
          %s77 = ssub.s32 576, 576
          %78 = vsyncadd [#allocation3], %s77
          %s80 = sshll.u32 [#allocation2], 4
          %s81 = int_to_ptr.vmem [resolvable:$true] %s80
          %83 = dma.hbm_to_vmem [thread:$0]  %s0, 576, %s81, [#allocation3]
        $region16: #{tpu_custom_call.1} parent=11 // pred_fallthru
          _
      $region12: #{tpu_custom_call.1} parent=5 // pred_fallthru
        _
      %p84 = scmp.lt.s32.totalorder %s11, 2
      // Predicated region
      $region17: #{tpu_custom_call.1} parent=5 // pred_check
        %p85 = pneg %p84
      $region18: #{tpu_custom_call.1} parent=5 // pred_check_branch
        %87 = sbr.rel (%p85) target = $region20
      $region19: #{tpu_custom_call.1} parent=5 // pred_region
        _
      $region20: #{tpu_custom_call.1} parent=5 // pred_fallthru
        _
      %p88 = scmp.le.s32.totalorder 1, %s11
      %p89 = scmp.lt.s32.totalorder %s11, 3
      %p90 = pnand %p88, %p89
      %p91 = pneg %p90
      // Predicated region
      $region21: #{tpu_custom_call.1} parent=5 // pred_check
        _
      $region22: #{tpu_custom_call.1} parent=5 // pred_check_branch
        %93 = sbr.rel (%p90) target = $region24
      $region23: #{tpu_custom_call.1} parent=5 // pred_region
        %s94 = ssub.s32 %s11, 1
        // Predicated region
        $region25: #{tpu_custom_call.1} parent=23 // pred_check
          %p95 = pneg %p32
        $region26: #{tpu_custom_call.1} parent=23 // pred_check_branch
          %97 = sbr.rel (%p95) target = $region28
        $region27: #{tpu_custom_call.1} parent=23 // pred_region
          %98 = dma.done [#allocation3], 576
        $region28: #{tpu_custom_call.1} parent=23 // pred_fallthru
          _
        %p99 = pneg %p32
        %p100 = pneg %p29
        %p101 = pneg %p58
        %p102 = pneg %p55
        %s103 = sand.u32 %s45, 1
        %s104 = scalar_lea.sflag [#allocation4], %s103
        %s105 = sand.u32 %s45, 1
        %s106 = smul.addr %s105, 72
        %s107 = scalar_lea.vmem [#allocation5], %s106
        %p108 = scmp.ge.s32.totalorder %s16, 1
        %s109 = scalar_select %p108, 4.0, 2.0
        %s110 = scalar_select %p108, 4.0, 8.0
        %s111 = scalar_select %p108, 0.25, 0.125
        %s112 = ssub.s32 %s16, 1
        %s113 = scalar_select %p108, %s112, %s16
        %s114 = smul.u32 %s113, 256
        %s115 = scvt.s32.f32 %s114
        %v116 = vld [vmem:[#allocation2] sm:$0x77]
        %v117 = vld [vmem:[#allocation2 + $0x8] sm:$0x77]
        %v118 = vld [vmem:[#allocation2 + $0x10] sm:$0x77]
        %v119 = vld [vmem:[#allocation2 + $0x18] sm:$0x77]
        %v120 = vld [vmem:[#allocation2 + $0x20] sm:$0x7]
        %v121 = vlaneseq
        %v122 = vshrl.u32 %v121, 7
        %v123 = vcvt.s32.f32 %v122
        %v124 = vmul.f32 %v123, 32.0
        %v125 = vstv %s115
        %v126 = vadd.f32 %v125, %v124
        %v132 = vlaneseq
        %v133 = vshrl.u32 %v132, 7
        %v134 = vsub.s32 2, %v133
        %v135 = vrot.slane %v116, %v134
        %v136 = vlaneseq
        %v137 = vshrl.u32 %v136, 7
        %v138 = vsub.s32 6, %v137
        %v139 = vrot.slane %v116, %v138
        %v140 = vlaneseq
        %v141 = vshrl.u32 %v140, 7
        %v142 = vsub.s32 2, %v141
        %v143 = vrot.slane %v117, %v142
        %v144 = vlaneseq
        %v145 = vshrl.u32 %v144, 7
        %v146 = vsub.s32 6, %v145
        %v147 = vrot.slane %v117, %v146
        %v148 = vlaneseq
        %v149 = vshrl.u32 %v148, 7
        %v150 = vsub.s32 2, %v149
        %v151 = vrot.slane %v118, %v150
        %v152 = vlaneseq
        %v153 = vshrl.u32 %v152, 7
        %v154 = vsub.s32 6, %v153
        %v155 = vrot.slane %v118, %v154
        %v156 = vlaneseq
        %v157 = vshrl.u32 %v156, 7
        %v158 = vsub.s32 2, %v157
        %v159 = vrot.slane %v119, %v158
        %v160 = vlaneseq
        %v161 = vshrl.u32 %v160, 7
        %v162 = vsub.s32 6, %v161
        %v163 = vrot.slane %v119, %v162
        %v164 = vlaneseq
        %v165 = vshrl.u32 %v164, 7
        %v166 = vsub.s32 2, %v165
        %v167 = vrot.slane %v120, %v166
        %v177 = vlaneseq
        %v178 = vshrl.u32 %v177, 7
        %v179 = vsub.s32 2, %v178
        %v180 = vrot.slane %v135, %v179
        %v181 = vlaneseq
        %v182 = vshrl.u32 %v181, 7
        %v183 = vsub.s32 2, %v182
        %v184 = vrot.slane %v139, %v183
        %v185 = vlaneseq
        %v186 = vshrl.u32 %v185, 7
        %v187 = vsub.s32 2, %v186
        %v188 = vrot.slane %v143, %v187
        %v189 = vlaneseq
        %v190 = vshrl.u32 %v189, 7
        %v191 = vsub.s32 2, %v190
        %v192 = vrot.slane %v147, %v191
        %v193 = vlaneseq
        %v194 = vshrl.u32 %v193, 7
        %v195 = vsub.s32 2, %v194
        %v196 = vrot.slane %v151, %v195
        %v197 = vlaneseq
        %v198 = vshrl.u32 %v197, 7
        %v199 = vsub.s32 2, %v198
        %v200 = vrot.slane %v155, %v199
        %v201 = vlaneseq
        %v202 = vshrl.u32 %v201, 7
        %v203 = vsub.s32 2, %v202
        %v204 = vrot.slane %v159, %v203
        %v205 = vlaneseq
        %v206 = vshrl.u32 %v205, 7
        %v207 = vsub.s32 2, %v206
        %v208 = vrot.slane %v163, %v207
        %v209 = vlaneseq
        %v210 = vshrl.u32 %v209, 7
        %v211 = vsub.s32 2, %v210
        %v212 = vrot.slane %v167, %v211
        %v213 = vadd.f32 %v126, %v180
        %v214 = vadd.f32 %v126, %v184
        %v215 = vadd.f32 %v126, %v188
        %v216 = vadd.f32 %v126, %v192
        %v217 = vadd.f32 %v126, %v196
        %v218 = vadd.f32 %v126, %v200
        %v219 = vadd.f32 %v126, %v204
        %v220 = vadd.f32 %v126, %v208
        %v221 = vadd.f32 %v126, %v212
        %v222 = vadd.f32 %v213, 0.5
        %v223 = vadd.f32 %v214, 0.5
        %v224 = vadd.f32 %v215, 0.5
        %v225 = vadd.f32 %v216, 0.5
        %v226 = vadd.f32 %v217, 0.5
        %v227 = vadd.f32 %v218, 0.5
        %v228 = vadd.f32 %v219, 0.5
        %v229 = vadd.f32 %v220, 0.5
        %v230 = vadd.f32 %v221, 0.5
        %v231 = vstv %s111
        %v232 = vmul.f32 %v222, %v231
        %v233 = vmul.f32 %v223, %v231
        %v234 = vmul.f32 %v224, %v231
        %v235 = vmul.f32 %v225, %v231
        %v236 = vmul.f32 %v226, %v231
        %v237 = vmul.f32 %v227, %v231
        %v238 = vmul.f32 %v228, %v231
        %v239 = vmul.f32 %v229, %v231
        %v240 = vmul.f32 %v230, %v231
        %v241 = vfloor.f32 %v232
        %v242 = vfloor.f32 %v233
        %v243 = vfloor.f32 %v234
        %v244 = vfloor.f32 %v235
        %v245 = vfloor.f32 %v236
        %v246 = vfloor.f32 %v237
        %v247 = vfloor.f32 %v238
        %v248 = vfloor.f32 %v239
        %v249 = vfloor.f32 %v240
        %v250 = vstv %s110
        %v251 = vmul.f32 %v241, %v250
        %v252 = vmul.f32 %v242, %v250
        %v253 = vmul.f32 %v243, %v250
        %v254 = vmul.f32 %v244, %v250
        %v255 = vmul.f32 %v245, %v250
        %v256 = vmul.f32 %v246, %v250
        %v257 = vmul.f32 %v247, %v250
        %v258 = vmul.f32 %v248, %v250
        %v259 = vmul.f32 %v249, %v250
        %v260 = vsub.f32 %v213, %v251
        %v261 = vsub.f32 %v214, %v252
        %v262 = vsub.f32 %v215, %v253
        %v263 = vsub.f32 %v216, %v254
        %v264 = vsub.f32 %v217, %v255
        %v265 = vsub.f32 %v218, %v256
        %v266 = vsub.f32 %v219, %v257
        %v267 = vsub.f32 %v220, %v258
        %v268 = vsub.f32 %v221, %v259
        %v269 = vadd.f32 %v260, 0.5
        %v270 = vadd.f32 %v261, 0.5
        %v271 = vadd.f32 %v262, 0.5
        %v272 = vadd.f32 %v263, 0.5
        %v273 = vadd.f32 %v264, 0.5
        %v274 = vadd.f32 %v265, 0.5
        %v275 = vadd.f32 %v266, 0.5
        %v276 = vadd.f32 %v267, 0.5
        %v277 = vadd.f32 %v268, 0.5
        %v278 = vlaneseq
        %v279 = vshrl.u32 %v278, 7
        %v280 = vsub.s32 0, %v279
        %v281 = vrot.slane %v116, %v280
        %v282 = vlaneseq
        %v283 = vshrl.u32 %v282, 7
        %v284 = vsub.s32 4, %v283
        %v285 = vrot.slane %v116, %v284
        %v286 = vlaneseq
        %v287 = vshrl.u32 %v286, 7
        %v288 = vsub.s32 0, %v287
        %v289 = vrot.slane %v117, %v288
        %v290 = vlaneseq
        %v291 = vshrl.u32 %v290, 7
        %v292 = vsub.s32 4, %v291
        %v293 = vrot.slane %v117, %v292
        %v294 = vlaneseq
        %v295 = vshrl.u32 %v294, 7
        %v296 = vsub.s32 0, %v295
        %v297 = vrot.slane %v118, %v296
        %v298 = vlaneseq
        %v299 = vshrl.u32 %v298, 7
        %v300 = vsub.s32 4, %v299
        %v301 = vrot.slane %v118, %v300
        %v302 = vlaneseq
        %v303 = vshrl.u32 %v302, 7
        %v304 = vsub.s32 0, %v303
        %v305 = vrot.slane %v119, %v304
        %v306 = vlaneseq
        %v307 = vshrl.u32 %v306, 7
        %v308 = vsub.s32 4, %v307
        %v309 = vrot.slane %v119, %v308
        %v310 = vlaneseq
        %v311 = vshrl.u32 %v310, 7
        %v312 = vsub.s32 0, %v311
        %v313 = vrot.slane %v120, %v312
        %v323 = vlaneseq
        %v324 = vshrl.u32 %v323, 7
        %v325 = vsub.s32 0, %v324
        %v326 = vrot.slane %v281, %v325
        %v327 = vlaneseq
        %v328 = vshrl.u32 %v327, 7
        %v329 = vsub.s32 0, %v328
        %v330 = vrot.slane %v285, %v329
        %v331 = vlaneseq
        %v332 = vshrl.u32 %v331, 7
        %v333 = vsub.s32 0, %v332
        %v334 = vrot.slane %v289, %v333
        %v335 = vlaneseq
        %v336 = vshrl.u32 %v335, 7
        %v337 = vsub.s32 0, %v336
        %v338 = vrot.slane %v293, %v337
        %v339 = vlaneseq
        %v340 = vshrl.u32 %v339, 7
        %v341 = vsub.s32 0, %v340
        %v342 = vrot.slane %v297, %v341
        %v343 = vlaneseq
        %v344 = vshrl.u32 %v343, 7
        %v345 = vsub.s32 0, %v344
        %v346 = vrot.slane %v301, %v345
        %v347 = vlaneseq
        %v348 = vshrl.u32 %v347, 7
        %v349 = vsub.s32 0, %v348
        %v350 = vrot.slane %v305, %v349
        %v351 = vlaneseq
        %v352 = vshrl.u32 %v351, 7
        %v353 = vsub.s32 0, %v352
        %v354 = vrot.slane %v309, %v353
        %v355 = vlaneseq
        %v356 = vshrl.u32 %v355, 7
        %v357 = vsub.s32 0, %v356
        %v358 = vrot.slane %v313, %v357
        %v359 = vmul.f32 %v326, %v269
        %v360 = vmul.f32 %v330, %v270
        %v361 = vmul.f32 %v334, %v271
        %v362 = vmul.f32 %v338, %v272
        %v363 = vmul.f32 %v342, %v273
        %v364 = vmul.f32 %v346, %v274
        %v365 = vmul.f32 %v350, %v275
        %v366 = vmul.f32 %v354, %v276
        %v367 = vmul.f32 %v358, %v277
        %v368 = vsub.f32 1.0, %v116
        %v369 = vsub.f32 1.0, %v117
        %v370 = vsub.f32 1.0, %v118
        %v371 = vsub.f32 1.0, %v119
        %v372 = vsub.f32 1.0, %v120
        %v373 = vadd.f32 %v241, 0.5
        %v374 = vadd.f32 %v242, 0.5
        %v375 = vadd.f32 %v243, 0.5
        %v376 = vadd.f32 %v244, 0.5
        %v377 = vadd.f32 %v245, 0.5
        %v378 = vadd.f32 %v246, 0.5
        %v379 = vadd.f32 %v247, 0.5
        %v380 = vadd.f32 %v248, 0.5
        %v381 = vadd.f32 %v249, 0.5
        %v387 = vlaneseq
        %v388 = vshrl.u32 %v387, 7
        %v389 = vsub.s32 0, %v388
        %v390 = vrot.slane %v368, %v389
        %v391 = vlaneseq
        %v392 = vshrl.u32 %v391, 7
        %v393 = vsub.s32 4, %v392
        %v394 = vrot.slane %v368, %v393
        %v395 = vlaneseq
        %v396 = vshrl.u32 %v395, 7
        %v397 = vsub.s32 0, %v396
        %v398 = vrot.slane %v369, %v397
        %v399 = vlaneseq
        %v400 = vshrl.u32 %v399, 7
        %v401 = vsub.s32 4, %v400
        %v402 = vrot.slane %v369, %v401
        %v403 = vlaneseq
        %v404 = vshrl.u32 %v403, 7
        %v405 = vsub.s32 0, %v404
        %v406 = vrot.slane %v370, %v405
        %v407 = vlaneseq
        %v408 = vshrl.u32 %v407, 7
        %v409 = vsub.s32 4, %v408
        %v410 = vrot.slane %v370, %v409
        %v411 = vlaneseq
        %v412 = vshrl.u32 %v411, 7
        %v413 = vsub.s32 0, %v412
        %v414 = vrot.slane %v371, %v413
        %v415 = vlaneseq
        %v416 = vshrl.u32 %v415, 7
        %v417 = vsub.s32 4, %v416
        %v418 = vrot.slane %v371, %v417
        %v419 = vlaneseq
        %v420 = vshrl.u32 %v419, 7
        %v421 = vsub.s32 0, %v420
        %v422 = vrot.slane %v372, %v421
        %v432 = vlaneseq
        %v433 = vshrl.u32 %v432, 7
        %v434 = vsub.s32 0, %v433
        %v435 = vrot.slane %v390, %v434
        %v436 = vlaneseq
        %v437 = vshrl.u32 %v436, 7
        %v438 = vsub.s32 0, %v437
        %v439 = vrot.slane %v394, %v438
        %v440 = vlaneseq
        %v441 = vshrl.u32 %v440, 7
        %v442 = vsub.s32 0, %v441
        %v443 = vrot.slane %v398, %v442
        %v444 = vlaneseq
        %v445 = vshrl.u32 %v444, 7
        %v446 = vsub.s32 0, %v445
        %v447 = vrot.slane %v402, %v446
        %v448 = vlaneseq
        %v449 = vshrl.u32 %v448, 7
        %v450 = vsub.s32 0, %v449
        %v451 = vrot.slane %v406, %v450
        %v452 = vlaneseq
        %v453 = vshrl.u32 %v452, 7
        %v454 = vsub.s32 0, %v453
        %v455 = vrot.slane %v410, %v454
        %v456 = vlaneseq
        %v457 = vshrl.u32 %v456, 7
        %v458 = vsub.s32 0, %v457
        %v459 = vrot.slane %v414, %v458
        %v460 = vlaneseq
        %v461 = vshrl.u32 %v460, 7
        %v462 = vsub.s32 0, %v461
        %v463 = vrot.slane %v418, %v462
        %v464 = vlaneseq
        %v465 = vshrl.u32 %v464, 7
        %v466 = vsub.s32 0, %v465
        %v467 = vrot.slane %v422, %v466
        %v468 = vmul.f32 %v435, %v373
        %v469 = vmul.f32 %v439, %v374
        %v470 = vmul.f32 %v443, %v375
        %v471 = vmul.f32 %v447, %v376
        %v472 = vmul.f32 %v451, %v377
        %v473 = vmul.f32 %v455, %v378
        %v474 = vmul.f32 %v459, %v379
        %v475 = vmul.f32 %v463, %v380
        %v476 = vmul.f32 %v467, %v381
        %v477 = vadd.f32 %v359, %v468
        %v478 = vadd.f32 %v360, %v469
        %v479 = vadd.f32 %v361, %v470
        %v480 = vadd.f32 %v362, %v471
        %v481 = vadd.f32 %v363, %v472
        %v482 = vadd.f32 %v364, %v473
        %v483 = vadd.f32 %v365, %v474
        %v484 = vadd.f32 %v366, %v475
        %v485 = vadd.f32 %v367, %v476
        %v486 = vlaneseq
        %v487 = vshrl.u32 %v486, 7
        %v488 = vsub.s32 1, %v487
        %v489 = vrot.slane %v116, %v488
        %v490 = vlaneseq
        %v491 = vshrl.u32 %v490, 7
        %v492 = vsub.s32 5, %v491
        %v493 = vrot.slane %v116, %v492
        %v494 = vlaneseq
        %v495 = vshrl.u32 %v494, 7
        %v496 = vsub.s32 1, %v495
        %v497 = vrot.slane %v117, %v496
        %v498 = vlaneseq
        %v499 = vshrl.u32 %v498, 7
        %v500 = vsub.s32 5, %v499
        %v501 = vrot.slane %v117, %v500
        %v502 = vlaneseq
        %v503 = vshrl.u32 %v502, 7
        %v504 = vsub.s32 1, %v503
        %v505 = vrot.slane %v118, %v504
        %v506 = vlaneseq
        %v507 = vshrl.u32 %v506, 7
        %v508 = vsub.s32 5, %v507
        %v509 = vrot.slane %v118, %v508
        %v510 = vlaneseq
        %v511 = vshrl.u32 %v510, 7
        %v512 = vsub.s32 1, %v511
        %v513 = vrot.slane %v119, %v512
        %v514 = vlaneseq
        %v515 = vshrl.u32 %v514, 7
        %v516 = vsub.s32 5, %v515
        %v517 = vrot.slane %v119, %v516
        %v518 = vlaneseq
        %v519 = vshrl.u32 %v518, 7
        %v520 = vsub.s32 1, %v519
        %v521 = vrot.slane %v120, %v520
        %v531 = vlaneseq
        %v532 = vshrl.u32 %v531, 7
        %v533 = vsub.s32 1, %v532
        %v534 = vrot.slane %v489, %v533
        %v535 = vlaneseq
        %v536 = vshrl.u32 %v535, 7
        %v537 = vsub.s32 1, %v536
        %v538 = vrot.slane %v493, %v537
        %v539 = vlaneseq
        %v540 = vshrl.u32 %v539, 7
        %v541 = vsub.s32 1, %v540
        %v542 = vrot.slane %v497, %v541
        %v543 = vlaneseq
        %v544 = vshrl.u32 %v543, 7
        %v545 = vsub.s32 1, %v544
        %v546 = vrot.slane %v501, %v545
        %v547 = vlaneseq
        %v548 = vshrl.u32 %v547, 7
        %v549 = vsub.s32 1, %v548
        %v550 = vrot.slane %v505, %v549
        %v551 = vlaneseq
        %v552 = vshrl.u32 %v551, 7
        %v553 = vsub.s32 1, %v552
        %v554 = vrot.slane %v509, %v553
        %v555 = vlaneseq
        %v556 = vshrl.u32 %v555, 7
        %v557 = vsub.s32 1, %v556
        %v558 = vrot.slane %v513, %v557
        %v559 = vlaneseq
        %v560 = vshrl.u32 %v559, 7
        %v561 = vsub.s32 1, %v560
        %v562 = vrot.slane %v517, %v561
        %v563 = vlaneseq
        %v564 = vshrl.u32 %v563, 7
        %v565 = vsub.s32 1, %v564
        %v566 = vrot.slane %v521, %v565
        %v567 = vadd.f32 %v477, %v534
        %v568 = vadd.f32 %v478, %v538
        %v569 = vadd.f32 %v479, %v542
        %v570 = vadd.f32 %v480, %v546
        %v571 = vadd.f32 %v481, %v550
        %v572 = vadd.f32 %v482, %v554
        %v573 = vadd.f32 %v483, %v558
        %v574 = vadd.f32 %v484, %v562
        %v575 = vadd.f32 %v485, %v566
        %v576 = vstv %s109
        %v577 = vmul.f32 %v567, %v576
        %v578 = vmul.f32 %v568, %v576
        %v579 = vmul.f32 %v569, %v576
        %v580 = vmul.f32 %v570, %v576
        %v581 = vmul.f32 %v571, %v576
        %v582 = vmul.f32 %v572, %v576
        %v583 = vmul.f32 %v573, %v576
        %v584 = vmul.f32 %v574, %v576
        %v585 = vmul.f32 %v575, %v576
        %586 = vst [vmem:[%s107] sm:$0xff] %v577
        %587 = vst [vmem:[%s107 + $0x8] sm:$0xff] %v578
        %588 = vst [vmem:[%s107 + $0x10] sm:$0xff] %v579
        %589 = vst [vmem:[%s107 + $0x18] sm:$0xff] %v580
        %590 = vst [vmem:[%s107 + $0x20] sm:$0xff] %v581
        %591 = vst [vmem:[%s107 + $0x28] sm:$0xff] %v582
        %592 = vst [vmem:[%s107 + $0x30] sm:$0xff] %v583
        %593 = vst [vmem:[%s107 + $0x38] sm:$0xff] %v584
        %594 = vst [vmem:[%s107 + $0x40] sm:$0xff] %v585
        %s595 = sand.u32 %s45, 1
        %s596 = scalar_lea.sflag [#allocation4], %s595
        %s597 = sand.u32 %s45, 1
        %s598 = smul.addr %s597, 72
        %s599 = scalar_lea.vmem [#allocation5], %s598
        // Predicated region
        $region29: #{tpu_custom_call.1} parent=23 // pred_check
          %p600 = pneg %p55
        $region30: #{tpu_custom_call.1} parent=23 // pred_check_branch
          %602 = sbr.rel (%p600) target = $region32
        $region31: #{tpu_custom_call.1} parent=23 // pred_region
          %s604 = ssub.s32 1152, 1152
          %605 = vsyncadd %s596, %s604
          %s606 = smul.addr %s16, 9
          %s607 = smul.addr %s606, 128
          %s608 = scalar_lea.hbm %s1, %s607
          %s610 = sshll.u32 %s599, 4
          %s611 = int_to_ptr.vmem [resolvable:$true] %s610
          %613 = dma.vmem_to_hbm [thread:$0]  %s611, 1152, %s608, %s596
        $region32: #{tpu_custom_call.1} parent=23 // pred_fallthru
          _
      $region24: #{tpu_custom_call.1} parent=5 // pred_fallthru
        _
      %p614 = scmp.le.s32.totalorder 2, %s11
      // Predicated region
      $region33: #{tpu_custom_call.1} parent=5 // pred_check
        %p615 = pneg %p614
      $region34: #{tpu_custom_call.1} parent=5 // pred_check_branch
        %617 = sbr.rel (%p615) target = $region36
      $region35: #{tpu_custom_call.1} parent=5 // pred_region
        %s618 = ssub.s32 %s11, 2
        // Predicated region
        $region37: #{tpu_custom_call.1} parent=35 // pred_check
          %p619 = pneg %p61
        $region38: #{tpu_custom_call.1} parent=35 // pred_check_branch
          %621 = sbr.rel (%p619) target = $region40
        $region39: #{tpu_custom_call.1} parent=35 // pred_region
          %s622 = sand.u32 %s46, 1
          %s623 = scalar_lea.sflag [#allocation4], %s622
          %s624 = sand.u32 %s46, 1
          %s625 = smul.addr %s624, 72
          %s626 = scalar_lea.vmem [#allocation5], %s625
          %627 = dma.done %s623, 1152
        $region40: #{tpu_custom_call.1} parent=35 // pred_fallthru
          _
      $region36: #{tpu_custom_call.1} parent=5 // pred_fallthru
        _
    $region6: #{tpu_custom_call.1} parent=1 // loop_footer
      %s15 = sadd.s32 1, %s11
    $region7: #{tpu_custom_call.1} parent=1 // loop_footer_branch
      %10 = sbr.rel target = $region3
    $region8: #{tpu_custom_call.1} parent=1 // loop_exit
      _
    %628 = vsyncpa [#allocation3], 1
    %s629 = scalar_lea.sflag [#allocation3], 1
    %630 = vsyncpa %s629, 1
    %631 = vsyncpa [#allocation4], 1
    %s632 = scalar_lea.sflag [#allocation4], 1
    %633 = vsyncpa %s632, 1

</llo_original>
